<compile_context>
chip_gen: v6e
topology: v6e:2x2x1
jax: 0.10.0
libtpu: 0.0.40
codegen_flags: <defaults>
</compile_context>

<pallas_src>
import functools

import jax
import jax.numpy as jnp
from jax import lax
from jax.experimental import pallas as pl
from jax.experimental.pallas import tpu as pltpu

BN_EPS = 1e-5


# --------------------------------------------------------------------------- #
# Fused Linear -> BatchNorm1d(train) -> (ReLU) kernel, tiled over (F_out, K).  #
# --------------------------------------------------------------------------- #
def _fused_linear_bn_kernel(x_ref, w_ref, g_ref, be_ref, o_ref, acc_ref,
                            *, apply_relu, inv_n):
    k = pl.program_id(1)

    @pl.when(k == 0)
    def _():
        acc_ref[...] = jnp.zeros_like(acc_ref)

    # MXU matmul, f32 accumulation (inputs may be bf16).
    acc_ref[...] += jnp.dot(x_ref[...], w_ref[...],
                            preferred_element_type=jnp.float32)

    @pl.when(k == pl.num_programs(1) - 1)
    def _():
        h = acc_ref[...]                                   # (N, tn) f32
        # Single-pass batch statistics over the (full) batch axis.
        s = jnp.sum(h, axis=0, keepdims=True)
        ss = jnp.sum(h * h, axis=0, keepdims=True)
        mean = s * inv_n
        var = jnp.maximum(ss * inv_n - mean * mean, 0.0)   # biased variance
        # Fold BN affine into per-feature scale/shift (2 VPU ops on the big tensor).
        scale = g_ref[...] * lax.rsqrt(var + BN_EPS)       # (1, tn), EUP rsqrt
        shift = be_ref[...] - mean * scale                 # (1, tn)
        y = h * scale + shift
        if apply_relu:
            y = jnp.maximum(y, 0.0)
        o_ref[...] = y.astype(o_ref.dtype)


def _pick_tile(dim, candidates=(512, 256, 128)):
    # Largest MXU/lane-aligned tile that divides `dim`; otherwise the full extent
    # (allowed by the (8,128) rule when the block equals the array dim).
    for t in candidates:
        if dim % t == 0:
            return t
    return dim


def fused_linear_bn_relu(x, w, gamma, beta, *, relu, out_dtype):
    """y = BN_train(x @ w) (* ReLU).  x:(N,K), w:(K,F), gamma/beta:(1,F)."""
    n, k_dim = x.shape
    kw, f = w.shape
    assert kw == k_dim
    tn = _pick_tile(f)
    tk = _pick_tile(k_dim)
    grid = (f // tn, k_dim // tk)

    # VMEM budget from actual block residency (double-buffered inputs/outputs
    # + resident f32 accumulator), with headroom.
    in_b = jnp.dtype(x.dtype).itemsize
    w_b = jnp.dtype(w.dtype).itemsize
    out_b = jnp.dtype(out_dtype).itemsize
    resident = (2 * n * tk * in_b          # x block, double-buffered
                + 2 * tk * tn * w_b        # weight block, double-buffered
                + 2 * n * tn * out_b       # output block, double-buffered
                + n * tn * 4               # f32 accumulator scratch
                + 4 * 2 * tn * 4)          # gamma/beta blocks
    vmem_limit = min(max(int(1.5 * resident) + (4 << 20), 32 << 20), 96 << 20)

    kernel = functools.partial(_fused_linear_bn_kernel,
                               apply_relu=relu, inv_n=1.0 / n)

    return pl.pallas_call(
        kernel,
        out_shape=jax.ShapeDtypeStruct((n, f), out_dtype),
        grid_spec=pltpu.PrefetchScalarGridSpec(
            num_scalar_prefetch=0,
            grid=grid,
            in_specs=[
                pl.BlockSpec((n, tk), lambda j, k: (0, k)),   # x: full batch, K tile
                pl.BlockSpec((tk, tn), lambda j, k: (k, j)),  # w: (K tile, F tile)
                pl.BlockSpec((1, tn), lambda j, k: (0, j)),   # gamma
                pl.BlockSpec((1, tn), lambda j, k: (0, j)),   # beta
            ],
            out_specs=pl.BlockSpec((n, tn), lambda j, k: (0, j)),
            scratch_shapes=[pltpu.VMEM((n, tn), jnp.float32)],
        ),
        compiler_params=pltpu.CompilerParams(
            dimension_semantics=("parallel", "arbitrary"),
            vmem_limit_bytes=vmem_limit,
        ),
    )(x, w, gamma, beta)


# --------------------------------------------------------------------------- #
# Full projection_MLP forward (3 fused layers).                                #
# --------------------------------------------------------------------------- #
def projection_mlp(x, params, *, compute_dtype=jnp.bfloat16,
                   out_dtype=jnp.float32):
    """x: (N, in_dim).  Linear biases are intentionally unused: they cancel
    under the training-mode BatchNorm that follows each Linear."""
    cd = compute_dtype
    h = fused_linear_bn_relu(x.astype(cd), params["w1"].astype(cd),
                             params["g1"], params["be1"],
                             relu=True, out_dtype=cd)
    h = fused_linear_bn_relu(h, params["w2"].astype(cd),
                             params["g2"], params["be2"],
                             relu=True, out_dtype=cd)
    # Final layer: Linear3 -> bn3, no ReLU.  out_dtype may be bf16 if the
    # consumer allows (halves output HBM writeback).
    h = fused_linear_bn_relu(h, params["w3"].astype(cd),
                             params["g3"], params["be3"],
                             relu=False, out_dtype=out_dtype)
    return h


# --------------------------------------------------------------------------- #
# Parameters & reference                                                       #
# --------------------------------------------------------------------------- #
def init_params(key, in_dim, hidden_dim, out_dim):
    """Deterministic synthetic parameters (PyTorch-like init).

    nn.Linear weight is (out, in); stored pre-transposed as (in, out).
    Biases are kept only for the reference check (they cancel in the kernel).
    bn3 is BatchNorm1d(hidden_dim) => requires hidden_dim == out_dim.
    """
    assert hidden_dim == out_dim, "bn3 is BatchNorm1d(hidden_dim); requires hidden_dim == out_dim"
    ks = jax.random.split(key, 6)

    def lin(kw, kb, fan_in, fan_out):
        bound = 1.0 / jnp.sqrt(fan_in)
        w = jax.random.uniform(kw, (fan_in, fan_out), jnp.float32, -bound, bound)
        b = jax.random.uniform(kb, (1, fan_out), jnp.float32, -bound, bound)
        return w, b

    w1, b1 = lin(ks[0], ks[1], in_dim, hidden_dim)
    w2, b2 = lin(ks[2], ks[3], hidden_dim, hidden_dim)
    w3, b3 = lin(ks[4], ks[5], hidden_dim, out_dim)

    def bn_affine(features, shift):
        g = 1.0 + 0.01 * jnp.arange(features, dtype=jnp.float32).reshape(1, features)
        b = shift + 0.001 * jnp.arange(features, dtype=jnp.float32).reshape(1, features)
        return g, b

    g1, be1 = bn_affine(hidden_dim, 0.1)
    g2, be2 = bn_affine(hidden_dim, -0.1)
    g3, be3 = bn_affine(hidden_dim, 0.05)

    return dict(
        w1=w1, b1=b1, g1=g1, be1=be1,
        w2=w2, b2=b2, g2=g2, be2=be2,
        w3=w3, b3=b3, g3=g3, be3=be3,
    )


def _reference(x, p, compute_dtype=jnp.bfloat16):
    """Pure-JAX mirror of the PyTorch forward (WITH biases, two-pass variance),
    using the same matmul precision as the kernel.  Verifies both the fused
    kernel and the bias-cancellation / folded-BN rewrites."""
    def bn(h, g, b):
        m = jnp.mean(h, axis=0, keepdims=True)
        v = jnp.mean((h - m) ** 2, axis=0, keepdims=True)
        return (h - m) / jnp.sqrt(v + BN_EPS) * g + b

    def lin(h, w, b):
        return jnp.dot(h.astype(compute_dtype), w.astype(compute_dtype),
                       preferred_element_type=jnp.float32) + b

    h = jnp.maximum(bn(lin(x, p["w1"], p["b1"]), p["g1"], p["be1"]), 0.0)
    h = jnp.maximum(bn(lin(h, p["w2"], p["b2"]), p["g2"], p["be2"]), 0.0)
    h = bn(lin(h, p["w3"], p["b3"]), p["g3"], p["be3"])
    return h


if __name__ == "__main__":
    # Small but lane-dense / MXU-aligned shapes (features multiple of 128,
    # batch multiple of 8).  x: (batch, in_dim).
    N, IN_DIM, HIDDEN, OUT = 16, 128, 256, 256

    key = jax.random.PRNGKey(0)
    kx, kp = jax.random.split(key)
    x = jax.random.normal(kx, (N, IN_DIM), dtype=jnp.float32)
    params = init_params(kp, IN_DIM, HIDDEN, OUT)

    out = jax.block_until_ready(projection_mlp(x, params))

    ref = _reference(x, params)
    assert out.shape == (N, OUT)
    max_err = float(jnp.max(jnp.abs(out - ref)))
    assert jnp.allclose(out, ref, atol=2e-2, rtol=2e-2), \
        f"mismatch vs reference (max abs err {max_err})"

    # TODO(synk): BatchNorm1d running_mean/running_var buffer updates (training-time
    # side effect) are not emitted; they do not affect the forward output.
    print("KERNEL_OK")
</pallas_src>

<mosaic_0001>
module attributes {stable_mosaic.version = 11 : i64} {
  func.func @_fused_linear_bn_kernel(%arg0: i32, %arg1: i32, %arg2: memref<16x128xbf16, #tpu.memory_space<vmem>>, %arg3: memref<128x256xbf16, #tpu.memory_space<vmem>>, %arg4: memref<1x256xf32, #tpu.memory_space<vmem>>, %arg5: memref<1x256xf32, #tpu.memory_space<vmem>>, %arg6: memref<16x256xbf16, #tpu.memory_space<vmem>>, %arg7: memref<16x256xf32, #tpu.memory_space<vmem>>) attributes {dimension_semantics = [#tpu.dimension_semantics<parallel>, #tpu.dimension_semantics<arbitrary>], iteration_bounds = array<i64: 1, 1>, scalar_prefetch = 0 : i64, scratch_operands = 1 : i64, tpu.core_type = #tpu.core_type<tc>, window_params = [{transform_indices = @transform_0, window_bounds = array<i64: 16, 128>}, {transform_indices = @transform_1, window_bounds = array<i64: 128, 256>}, {transform_indices = @transform_2, window_bounds = array<i64: 1, 256>}, {transform_indices = @transform_3, window_bounds = array<i64: 1, 256>}, {transform_indices = @transform_4, window_bounds = array<i64: 16, 256>}]} {
    %c0_i32 = arith.constant 0 : i32
    %0 = arith.cmpi eq, %arg1, %c0_i32 : i32
    %1 = arith.extui %0 : i1 to i32
    %c0_i32_0 = arith.constant 0 : i32
    %2 = arith.cmpi ne, %1, %c0_i32_0 : i32
    scf.if %2 {
      %cst_10 = arith.constant 0.000000e+00 : f32
      %12 = vector.broadcast %cst_10 : f32 to vector<16x256xf32>
      %c0_11 = arith.constant 0 : index
      %c0_12 = arith.constant 0 : index
      %13 = vector.load %arg7[%c0_11, %c0_12] : memref<16x256xf32, #tpu.memory_space<vmem>>, vector<16x256xf32>
      tpu.vector_store %arg7[%c0_11, %c0_12], %12 {strides = array<i32>} : memref<16x256xf32, #tpu.memory_space<vmem>>, vector<16x256xf32>,
    } else {
    }
    %c0 = arith.constant 0 : index
    %c0_1 = arith.constant 0 : index
    %3 = vector.load %arg7[%c0, %c0_1] : memref<16x256xf32, #tpu.memory_space<vmem>>, vector<16x256xf32>
    %c0_2 = arith.constant 0 : index
    %c0_3 = arith.constant 0 : index
    %4 = vector.load %arg2[%c0_2, %c0_3] : memref<16x128xbf16, #tpu.memory_space<vmem>>, vector<16x128xbf16>
    %c0_4 = arith.constant 0 : index
    %c0_5 = arith.constant 0 : index
    %5 = vector.load %arg3[%c0_4, %c0_5] : memref<128x256xbf16, #tpu.memory_space<vmem>>, vector<128x256xbf16>
    %cst = arith.constant dense<0.000000e+00> : vector<16x256xf32>
    %6 = tpu.matmul %4, %5, %cst {dimension_numbers = #tpu.dot_dimension_numbers<[1], [0], [0], [1], [0, 0, 1, 1], [], []>} : vector<16x128xbf16>, vector<128x256xbf16>, vector<16x256xf32> -> vector<16x256xf32>
    %7 = arith.addf %3, %6 : vector<16x256xf32>
    %c0_6 = arith.constant 0 : index
    %c0_7 = arith.constant 0 : index
    %8 = vector.load %arg7[%c0_6, %c0_7] : memref<16x256xf32, #tpu.memory_space<vmem>>, vector<16x256xf32>
    tpu.vector_store %arg7[%c0_6, %c0_7], %7 {strides = array<i32>} : memref<16x256xf32, #tpu.memory_space<vmem>>, vector<16x256xf32>,
    %c0_i32_8 = arith.constant 0 : i32
    %9 = arith.cmpi eq, %arg1, %c0_i32_8 : i32
    %10 = arith.extui %9 : i1 to i32
    %c0_i32_9 = arith.constant 0 : i32
    %11 = arith.cmpi ne, %10, %c0_i32_9 : i32
    scf.if %11 {
      %c0_10 = arith.constant 0 : index
      %c0_11 = arith.constant 0 : index
      %12 = vector.load %arg7[%c0_10, %c0_11] : memref<16x256xf32, #tpu.memory_space<vmem>>, vector<16x256xf32>
      %cst_12 = arith.constant dense<0.000000e+00> : vector<256xf32>
      %13 = vector.multi_reduction <add>, %12, %cst_12 [0] : vector<16x256xf32> to vector<256xf32>
      %14 = vector.shape_cast %13 : vector<256xf32> to vector<1x256xf32>
      %15 = arith.mulf %12, %12 : vector<16x256xf32>
      %cst_13 = arith.constant dense<0.000000e+00> : vector<256xf32>
      %16 = vector.multi_reduction <add>, %15, %cst_13 [0] : vector<16x256xf32> to vector<256xf32>
      %17 = vector.shape_cast %16 : vector<256xf32> to vector<1x256xf32>
      %cst_14 = arith.constant 6.250000e-02 : f32
      %18 = vector.broadcast %cst_14 : f32 to vector<1x256xf32>
      %19 = arith.mulf %14, %18 : vector<1x256xf32>
      %cst_15 = arith.constant 6.250000e-02 : f32
      %20 = vector.broadcast %cst_15 : f32 to vector<1x256xf32>
      %21 = arith.mulf %17, %20 : vector<1x256xf32>
      %22 = arith.mulf %19, %19 : vector<1x256xf32>
      %23 = arith.subf %21, %22 : vector<1x256xf32>
      %cst_16 = arith.constant 0.000000e+00 : f32
      %24 = vector.broadcast %cst_16 : f32 to vector<1x256xf32>
      %25 = arith.maximumf %23, %24 : vector<1x256xf32>
      %c0_17 = arith.constant 0 : index
      %c0_18 = arith.constant 0 : index
      %26 = vector.load %arg4[%c0_17, %c0_18] : memref<1x256xf32, #tpu.memory_space<vmem>>, vector<1x256xf32>
      %cst_19 = arith.constant 9.99999974E-6 : f32
      %27 = vector.broadcast %cst_19 : f32 to vector<1x256xf32>
      %28 = arith.addf %25, %27 : vector<1x256xf32>
      %29 = math.rsqrt %28 : vector<1x256xf32>
      %30 = arith.mulf %26, %29 : vector<1x256xf32>
      %c0_20 = arith.constant 0 : index
      %c0_21 = arith.constant 0 : index
      %31 = vector.load %arg5[%c0_20, %c0_21] : memref<1x256xf32, #tpu.memory_space<vmem>>, vector<1x256xf32>
      %32 = arith.mulf %19, %30 : vector<1x256xf32>
      %33 = arith.subf %31, %32 : vector<1x256xf32>
      %34 = vector.broadcast %30 : vector<1x256xf32> to vector<16x256xf32>
      %35 = arith.mulf %12, %34 : vector<16x256xf32>
      %36 = vector.broadcast %33 : vector<1x256xf32> to vector<16x256xf32>
      %37 = arith.addf %35, %36 : vector<16x256xf32>
      %cst_22 = arith.constant 0.000000e+00 : f32
      %38 = vector.broadcast %cst_22 : f32 to vector<16x256xf32>
      %39 = arith.maximumf %37, %38 : vector<16x256xf32>
      %40 = arith.truncf %39 : vector<16x256xf32> to vector<16x256xbf16>
      %c0_23 = arith.constant 0 : index
      %c0_24 = arith.constant 0 : index
      %41 = vector.load %arg6[%c0_23, %c0_24] : memref<16x256xbf16, #tpu.memory_space<vmem>>, vector<16x256xbf16>
      tpu.vector_store %arg6[%c0_23, %c0_24], %40 {strides = array<i32>} : memref<16x256xbf16, #tpu.memory_space<vmem>>, vector<16x256xbf16>,
    } else {
    }
    return
  }
  func.func @transform_0(%arg0: i32, %arg1: i32) -> (i32, i32) {
    %c0_i32 = arith.constant 0 : i32
    %c0_i32_0 = arith.constant 0 : i32
    return %c0_i32, %arg1 : i32, i32
  }
  func.func @transform_1(%arg0: i32, %arg1: i32) -> (i32, i32) {
    %c0_i32 = arith.constant 0 : i32
    return %arg1, %arg0 : i32, i32
  }
  func.func @transform_2(%arg0: i32, %arg1: i32) -> (i32, i32) {
    %c0_i32 = arith.constant 0 : i32
    %c0_i32_0 = arith.constant 0 : i32
    return %c0_i32, %arg0 : i32, i32
  }
  func.func @transform_3(%arg0: i32, %arg1: i32) -> (i32, i32) {
    %c0_i32 = arith.constant 0 : i32
    %c0_i32_0 = arith.constant 0 : i32
    return %c0_i32, %arg0 : i32, i32
  }
  func.func @transform_4(%arg0: i32, %arg1: i32) -> (i32, i32) {
    %c0_i32 = arith.constant 0 : i32
    %c0_i32_0 = arith.constant 0 : i32
    return %c0_i32, %arg0 : i32, i32
  }
}

</mosaic_0001>

<llo_original>
// kernel: tpu_custom_call.1
$region0: #{tpu_custom_call.1}
  #allocation0 [shape = 'u32[]', space=smem, size = 0x4, offset = 0x4, fixed_abs, tag = 'smem constant byte address 0x4 - core index']
  #allocation1 [shape = 'u32[144,128]{1,0:T(1,128)}', space=vmem, size = 0x12000, scoped, tag = 'internal scratch']
  #allocation2 [shape = 'f32[16,256]{1,0:T(8,128)}', space=vmem, size = 0x4000, scoped, tag = 'scratch operand']
  %s0 = inlined_call_operand.hbm [shape: bf16[16,128], index: 0, kind: input, shape index: {}]
  %s1 = inlined_call_operand.hbm [shape: bf16[128,256], index: 1, kind: input, shape index: {}]
  %s2 = inlined_call_operand.vmem [shape: f32[1,256], index: 2, kind: input, shape index: {}]
  %s3 = inlined_call_operand.vmem [shape: f32[1,256], index: 3, kind: input, shape index: {}]
  %s4 = inlined_call_operand.hbm [shape: bf16[16,256], index: 4, kind: output, shape index: {}]
  %s5 = sld [smem:[#allocation0]]
  $region42: #{tpu_custom_call.1} parent=0
    _
  %s7 = ssub.s32 1, %s5
  %s8 = scalar_select 0, %s7, %s5
  $region1: #{tpu_custom_call.1} parent=0
    #allocation3 [shape = 'u8[4096]{0}', space=vmem, size = 0x1000, scoped, tag = 'input window, operand 0, single buffered']
    #allocation4 [shape = 's32[1]{0}', space=sflag, size = 0x4, scoped, tag = 'scoped memory for tpu_custom_call.1']
    #allocation5 [shape = 's32[1]{0}', space=sflag, size = 0x4, scoped, tag = 'scoped memory for tpu_custom_call.1']
    #allocation6 [shape = 'u8[65536]{0}', space=vmem, size = 0x10000, scoped, tag = 'input window, operand 1, single buffered']
    #allocation7 [shape = 's32[1]{0}', space=sflag, size = 0x4, scoped, tag = 'scoped memory for tpu_custom_call.1']
    #allocation8 [shape = 'u8[8192]{0}', space=vmem, size = 0x2000, scoped, tag = 'output window, operand 0, single buffered']
    %9 = vsyncpa [#allocation4], 0
    %10 = vsyncpa [#allocation7], 0
    %11 = vsyncpa [#allocation5], 0
    // Predicated region
    $region2: #{tpu_custom_call.1} parent=1 // pred_check
      _
    $region3: #{tpu_custom_call.1} parent=1 // pred_check_branch
      %13 = sbr.rel (0) target = $region5
    $region4: #{tpu_custom_call.1} parent=1 // pred_region
      %s15 = ssub.s32 128, 128
      %16 = vsyncadd [#allocation4], %s15
      %s17 = sshll.u32 [#allocation3], 4
      %s18 = int_to_ptr.vmem [resolvable:$true] %s17
      %23 = dma.hbm_to_vmem [thread:$0]  %s0, 128, %s18, [#allocation4], 64, 64, 4
    $region5: #{tpu_custom_call.1} parent=1 // pred_fallthru
      _
    // Predicated region
    $region6: #{tpu_custom_call.1} parent=1 // pred_check
      _
    $region7: #{tpu_custom_call.1} parent=1 // pred_check_branch
      %25 = sbr.rel (0) target = $region9
    $region8: #{tpu_custom_call.1} parent=1 // pred_region
      %s27 = ssub.s32 2048, 2048
      %28 = vsyncadd [#allocation7], %s27
      %s29 = sshll.u32 [#allocation6], 4
      %s30 = int_to_ptr.vmem [resolvable:$true] %s29
      %35 = dma.hbm_to_vmem [thread:$0]  %s1, 2048, %s30, [#allocation7], 128, 128, 8
    $region9: #{tpu_custom_call.1} parent=1 // pred_fallthru
      _
    // Predicated region
    $region10: #{tpu_custom_call.1} parent=1 // pred_check
      _
    $region11: #{tpu_custom_call.1} parent=1 // pred_check_branch
      %37 = sbr.rel (0) target = $region13
    $region12: #{tpu_custom_call.1} parent=1 // pred_region
      _
    $region13: #{tpu_custom_call.1} parent=1 // pred_fallthru
      _
    // Predicated region
    $region14: #{tpu_custom_call.1} parent=1 // pred_check
      _
    $region15: #{tpu_custom_call.1} parent=1 // pred_check_branch
      %39 = sbr.rel (0) target = $region17
    $region16: #{tpu_custom_call.1} parent=1 // pred_region
      _
    $region17: #{tpu_custom_call.1} parent=1 // pred_fallthru
      _
    // Predicated region
    $region18: #{tpu_custom_call.1} parent=1 // pred_check
      _
    $region19: #{tpu_custom_call.1} parent=1 // pred_check_branch
      %41 = sbr.rel (0) target = $region21
    $region20: #{tpu_custom_call.1} parent=1 // pred_region
      %42 = dma.done [#allocation4], 128
    $region21: #{tpu_custom_call.1} parent=1 // pred_fallthru
      _
    // Predicated region
    $region22: #{tpu_custom_call.1} parent=1 // pred_check
      _
    $region23: #{tpu_custom_call.1} parent=1 // pred_check_branch
      %44 = sbr.rel (0) target = $region25
    $region24: #{tpu_custom_call.1} parent=1 // pred_region
      %45 = dma.done [#allocation7], 2048
    $region25: #{tpu_custom_call.1} parent=1 // pred_fallthru
      _
    %p47 = scmp.eq.s32.totalorder 0, 0
    // Predicated region
    $region26: #{tpu_custom_call.1} parent=1 // pred_check
      %p48 = pneg %p47
    $region27: #{tpu_custom_call.1} parent=1 // pred_check_branch
      %50 = sbr.rel (%p48) target = $region29
    $region28: #{tpu_custom_call.1} parent=1 // pred_region
      %51 = vst [vmem:[#allocation2] sm:$0xff] 0.0
      %52 = vst [vmem:[#allocation2 + $0x8] sm:$0xff] 0.0
      %53 = vst [vmem:[#allocation2 + $0x10] sm:$0xff] 0.0
      %54 = vst [vmem:[#allocation2 + $0x18] sm:$0xff] 0.0
    $region29: #{tpu_custom_call.1} parent=1 // pred_fallthru
      _
    %v55 = vld [vmem:[#allocation2] sm:$0xff]
    %v56 = vld [vmem:[#allocation2 + $0x8] sm:$0xff]
    %v57 = vld [vmem:[#allocation2 + $0x10] sm:$0xff]
    %v58 = vld [vmem:[#allocation2 + $0x18] sm:$0xff]
    %v59 = vld [vmem:[#allocation3] sm:$0xf]
    %v60 = vld [vmem:[#allocation3 + $0x4] sm:$0xf]
    %v61 = vld [vmem:[#allocation6] sm:$0xff]
    %v62 = vld [vmem:[#allocation6 + $0x8] sm:$0xff]
    %v63 = vld [vmem:[#allocation6 + $0x10] sm:$0xff]
    %v64 = vld [vmem:[#allocation6 + $0x18] sm:$0xff]
    %v65 = vld [vmem:[#allocation6 + $0x20] sm:$0xff]
    %v66 = vld [vmem:[#allocation6 + $0x28] sm:$0xff]
    %v67 = vld [vmem:[#allocation6 + $0x30] sm:$0xff]
    %v68 = vld [vmem:[#allocation6 + $0x38] sm:$0xff]
    %v69 = vld [vmem:[#allocation6 + $0x40] sm:$0xff]
    %v70 = vld [vmem:[#allocation6 + $0x48] sm:$0xff]
    %v71 = vld [vmem:[#allocation6 + $0x50] sm:$0xff]
    %v72 = vld [vmem:[#allocation6 + $0x58] sm:$0xff]
    %v73 = vld [vmem:[#allocation6 + $0x60] sm:$0xff]
    %v74 = vld [vmem:[#allocation6 + $0x68] sm:$0xff]
    %v75 = vld [vmem:[#allocation6 + $0x70] sm:$0xff]
    %v76 = vld [vmem:[#allocation6 + $0x78] sm:$0xff]
    %v79 = vunpack.c.l.b16 %v59
    %v80 = vunpack.c.l.b16 %v60
    %v81 = vpack.c.b16 %v80, %v79
    %v99 = vunpack.c.l.b16 %v61
    %v100 = vunpack.c.h.b16 %v61
    %v101 = vunpack.c.l.b16 %v62
    %v102 = vunpack.c.h.b16 %v62
    %v103 = vunpack.c.l.b16 %v63
    %v104 = vunpack.c.h.b16 %v63
    %v105 = vunpack.c.l.b16 %v64
    %v106 = vunpack.c.h.b16 %v64
    %v107 = vunpack.c.l.b16 %v65
    %v108 = vunpack.c.h.b16 %v65
    %v109 = vunpack.c.l.b16 %v66
    %v110 = vunpack.c.h.b16 %v66
    %v111 = vunpack.c.l.b16 %v67
    %v112 = vunpack.c.h.b16 %v67
    %v113 = vunpack.c.l.b16 %v68
    %v114 = vunpack.c.h.b16 %v68
    %v115 = vunpack.c.l.b16 %v69
    %v116 = vunpack.c.h.b16 %v69
    %v117 = vunpack.c.l.b16 %v70
    %v118 = vunpack.c.h.b16 %v70
    %v119 = vunpack.c.l.b16 %v71
    %v120 = vunpack.c.h.b16 %v71
    %v121 = vunpack.c.l.b16 %v72
    %v122 = vunpack.c.h.b16 %v72
    %v123 = vunpack.c.l.b16 %v73
    %v124 = vunpack.c.h.b16 %v73
    %v125 = vunpack.c.l.b16 %v74
    %v126 = vunpack.c.h.b16 %v74
    %v127 = vunpack.c.l.b16 %v75
    %v128 = vunpack.c.h.b16 %v75
    %v129 = vunpack.c.l.b16 %v76
    %v130 = vunpack.c.h.b16 %v76
    %v131 = vpack.c.b16 %v101, %v99
    %v132 = vpack.c.b16 %v102, %v100
    %v133 = vpack.c.b16 %v105, %v103
    %v134 = vpack.c.b16 %v106, %v104
    %v135 = vpack.c.b16 %v109, %v107
    %v136 = vpack.c.b16 %v110, %v108
    %v137 = vpack.c.b16 %v113, %v111
    %v138 = vpack.c.b16 %v114, %v112
    %v139 = vpack.c.b16 %v117, %v115
    %v140 = vpack.c.b16 %v118, %v116
    %v141 = vpack.c.b16 %v121, %v119
    %v142 = vpack.c.b16 %v122, %v120
    %v143 = vpack.c.b16 %v125, %v123
    %v144 = vpack.c.b16 %v126, %v124
    %v145 = vpack.c.b16 %v129, %v127
    %v146 = vpack.c.b16 %v130, %v128
    %163 = vmatprep.subr.bf16.mxu0 %v146
    %164 = vmatpush1.bf16.msra.mxu0 %v145
    %165 = vmatprep.subr.bf16.mxu0 %v144
    %166 = vmatpush1.bf16.msra.mxu0 %v143
    %167 = vmatprep.subr.bf16.mxu0 %v142
    %168 = vmatpush1.bf16.msra.mxu0 %v141
    %169 = vmatprep.subr.bf16.mxu0 %v140
    %170 = vmatpush1.bf16.msra.mxu0 %v139
    %171 = vmatprep.subr.bf16.mxu0 %v138
    %172 = vmatpush1.bf16.msra.mxu0 %v137
    %173 = vmatprep.subr.bf16.mxu0 %v136
    %174 = vmatpush1.bf16.msra.mxu0 %v135
    %175 = vmatprep.subr.bf16.mxu0 %v134
    %176 = vmatpush1.bf16.msra.mxu0 %v133
    %177 = vmatprep.subr.bf16.mxu0 %v132
    %178 = vmatpush1.bf16.msra.mxu0 %v131
    %179 = vmatprep.subr.bf16.mxu0 0
    %180 = vmatpush2.bf16.msra.mxu0 0
    %181 = vmatprep.subr.bf16.mxu0 0
    %182 = vmatpush2.bf16.msra.mxu0 0
    %183 = vmatprep.subr.bf16.mxu0 0
    %184 = vmatpush2.bf16.msra.mxu0 0
    %185 = vmatprep.subr.bf16.mxu0 0
    %186 = vmatpush2.bf16.msra.mxu0 0
    %187 = vmatprep.subr.bf16.mxu0 0
    %188 = vmatpush2.bf16.msra.mxu0 0
    %189 = vmatprep.subr.bf16.mxu0 0
    %190 = vmatpush2.bf16.msra.mxu0 0
    %191 = vmatprep.subr.bf16.mxu0 0
    %192 = vmatpush2.bf16.msra.mxu0 0
    %193 = vmatprep.subr.bf16.mxu0 0
    %194 = vmatpush2.bf16.msra.mxu0 0
    %195 = vmatprep.mubr.bf16.mxu0 0
    %196 = vmatmul.mubr.bf16.gmra.mxu0 %v81
    %v197 = vpop.f32.mrf.mxu0
    %v198 = vadd.f32 0.0, %v197
    %v199 = vpop.f32.mrf.mxu0
    %v200 = vadd.f32 0.0, %v199
    %v201 = vpop.f32.mrf.mxu0
    %v202 = vadd.f32 0.0, %v201
    %v203 = vpop.f32.mrf.mxu0
    %v204 = vadd.f32 0.0, %v203
    %205 = vdwg.mxu0
    %v206 = vadd.f32 %v55, %v198
    %v207 = vadd.f32 %v56, %v200
    %v208 = vadd.f32 %v57, %v202
    %v209 = vadd.f32 %v58, %v204
    %210 = vst [vmem:[#allocation2] sm:$0xff] %v206
    %211 = vst [vmem:[#allocation2 + $0x8] sm:$0xff] %v207
    %212 = vst [vmem:[#allocation2 + $0x10] sm:$0xff] %v208
    %213 = vst [vmem:[#allocation2 + $0x18] sm:$0xff] %v209
    // Predicated region
    $region30: #{tpu_custom_call.1} parent=1 // pred_check
      %p214 = pneg %p47
    $region31: #{tpu_custom_call.1} parent=1 // pred_check_branch
      %216 = sbr.rel (%p214) target = $region33
    $region32: #{tpu_custom_call.1} parent=1 // pred_region
      %v217 = vld [vmem:[#allocation2] sm:$0xff]
      %v218 = vld [vmem:[#allocation2 + $0x8] sm:$0xff]
      %v219 = vld [vmem:[#allocation2 + $0x10] sm:$0xff]
      %v220 = vld [vmem:[#allocation2 + $0x18] sm:$0xff]
      %v221 = vadd.f32 %v217, %v219
      %v222 = vrot.slane %v221, 4
      %v223 = vadd.f32 %v221, %v222
      %v224 = vrot.slane %v223, 2
      %v225 = vadd.f32 %v223, %v224
      %v226 = vrot.slane %v225, 1
      %v227 = vadd.f32 %v225, %v226
      %v228 = vadd.f32 %v218, %v220
      %v229 = vrot.slane %v228, 4
      %v230 = vadd.f32 %v228, %v229
      %v231 = vrot.slane %v230, 2
      %v232 = vadd.f32 %v230, %v231
      %v233 = vrot.slane %v232, 1
      %v234 = vadd.f32 %v232, %v233
      %v235 = vmul.f32 %v217, %v217
      %v236 = vmul.f32 %v218, %v218
      %v237 = vmul.f32 %v219, %v219
      %v238 = vmul.f32 %v220, %v220
      %v239 = vadd.f32 %v235, %v237
      %v240 = vrot.slane %v239, 4
      %v241 = vadd.f32 %v239, %v240
      %v242 = vrot.slane %v241, 2
      %v243 = vadd.f32 %v241, %v242
      %v244 = vrot.slane %v243, 1
      %v245 = vadd.f32 %v243, %v244
      %v246 = vadd.f32 %v236, %v238
      %v247 = vrot.slane %v246, 4
      %v248 = vadd.f32 %v246, %v247
      %v249 = vrot.slane %v248, 2
      %v250 = vadd.f32 %v248, %v249
      %v251 = vrot.slane %v250, 1
      %v252 = vadd.f32 %v250, %v251
      %v253 = vmul.f32 %v227, 0.0625
      %v254 = vmul.f32 %v234, 0.0625
      %v255 = vmul.f32 %v245, 0.0625
      %v256 = vmul.f32 %v252, 0.0625
      %v257 = vmul.f32 %v253, %v253
      %v258 = vmul.f32 %v254, %v254
      %v259 = vsub.f32 %v255, %v257
      %v260 = vsub.f32 %v256, %v258
      %v261 = vmax.f32 %v259, 0.0
      %v262 = vmax.f32 %v260, 0.0
      %v263 = vld [vmem:[%s2] sm:$0x3]
      %v264 = vadd.f32 %v261, 1e-05
      %v265 = vadd.f32 %v262, 1e-05
      %v266 = vrsqrt.pop %v264
      %v267 = vrsqrt.pop %v265
      %v270 = vcombine.low %v266, %v267
      %v272 = vunpack.c.l.s4 1966171168
      %v273 = vunpack.c.0.s8 %v272
      %v274 = vlaneseq
      %v275 = vshrl.u32 %v274, 7
      %v276 = vsub.s32 %v273, %v275
      %v277 = vrot.slane %v270, %v276
      %v279 = vunpack.c.l.s4 1966171168
      %v280 = vunpack.c.0.s8 %v279
      %v281 = vlaneseq
      %v282 = vshrl.u32 %v281, 7
      %v283 = vsub.s32 %v280, %v282
      %v284 = vrot.slane %v277, %v283
      %v286 = vmul.f32 %v263, %v284
      %v287 = vld [vmem:[%s3] sm:$0x3]
      %v289 = vlaneseq
      %v290 = vshrl.u32 %v289, 7
      %v291 = vsub.s32 0, %v290
      %v292 = vrot.slane %v286, %v291
      %v293 = vlaneseq
      %v294 = vshrl.u32 %v293, 7
      %v295 = vsub.s32 1, %v294
      %v296 = vrot.slane %v286, %v295
      %v299 = vmul.f32 %v253, %v292
      %v300 = vmul.f32 %v254, %v296
      %v303 = vcombine.low %v299, %v300
      %v305 = vunpack.c.l.s4 1966171168
      %v306 = vunpack.c.0.s8 %v305
      %v307 = vlaneseq
      %v308 = vshrl.u32 %v307, 7
      %v309 = vsub.s32 %v306, %v308
      %v310 = vrot.slane %v303, %v309
      %v312 = vunpack.c.l.s4 1966171168
      %v313 = vunpack.c.0.s8 %v312
      %v314 = vlaneseq
      %v315 = vshrl.u32 %v314, 7
      %v316 = vsub.s32 %v313, %v315
      %v317 = vrot.slane %v310, %v316
      %v319 = vsub.f32 %v287, %v317
      %v320 = vmul.f32 %v217, %v292
      %v321 = vmul.f32 %v218, %v296
      %v322 = vmul.f32 %v219, %v292
      %v323 = vmul.f32 %v220, %v296
      %v325 = vlaneseq
      %v326 = vshrl.u32 %v325, 7
      %v327 = vsub.s32 0, %v326
      %v328 = vrot.slane %v319, %v327
      %v329 = vlaneseq
      %v330 = vshrl.u32 %v329, 7
      %v331 = vsub.s32 1, %v330
      %v332 = vrot.slane %v319, %v331
      %v335 = vadd.f32 %v320, %v328
      %v336 = vadd.f32 %v321, %v332
      %v337 = vadd.f32 %v322, %v328
      %v338 = vadd.f32 %v323, %v332
      %v339 = vmax.f32 %v335, 0.0
      %v340 = vmax.f32 %v336, 0.0
      %v341 = vmax.f32 %v337, 0.0
      %v342 = vmax.f32 %v338, 0.0
      %v343 = vpack.c.bf16 %v341, %v339
      %v344 = vpack.c.bf16 %v342, %v340
      %v347 = vunpack.c.l.b16 %v343
      %v348 = vunpack.c.l.b16 %v344
      %v349 = vunpack.c.h.b16 %v343
      %v350 = vunpack.c.h.b16 %v344
      %v351 = vpack.c.b16 %v348, %v347
      %v352 = vpack.c.b16 %v350, %v349
      %355 = vst [vmem:[#allocation8] sm:$0xff] %v351
      %356 = vst [vmem:[#allocation8 + $0x8] sm:$0xff] %v352
    $region33: #{tpu_custom_call.1} parent=1 // pred_fallthru
      _
    // Predicated region
    $region34: #{tpu_custom_call.1} parent=1 // pred_check
      _
    $region35: #{tpu_custom_call.1} parent=1 // pred_check_branch
      %358 = sbr.rel (0) target = $region37
    $region36: #{tpu_custom_call.1} parent=1 // pred_region
      %s360 = ssub.s32 256, 256
      %361 = vsyncadd [#allocation5], %s360
      %s362 = sshll.u32 [#allocation8], 4
      %s363 = int_to_ptr.vmem [resolvable:$true] %s362
      %368 = dma.vmem_to_hbm [thread:$0]  %s363, 256, %s4, [#allocation5], 128, 128, 8
    $region37: #{tpu_custom_call.1} parent=1 // pred_fallthru
      _
    // Predicated region
    $region38: #{tpu_custom_call.1} parent=1 // pred_check
      _
    $region39: #{tpu_custom_call.1} parent=1 // pred_check_branch
      %370 = sbr.rel (0) target = $region41
    $region40: #{tpu_custom_call.1} parent=1 // pred_region
      %371 = dma.done [#allocation5], 256
    $region41: #{tpu_custom_call.1} parent=1 // pred_fallthru
      _
    %372 = vsyncpa [#allocation4], 1
    %373 = vsyncpa [#allocation7], 1
    %374 = vsyncpa [#allocation5], 1

</llo_original>
